<compile_context>
chip_gen: v5e
topology: v5e:2x2
jax: 0.10.0
libtpu: 0.0.40
codegen_flags: <defaults>
</compile_context>

<pallas_src>
import jax
import jax.numpy as jnp
from jax.experimental import pallas as pl
from jax.experimental.pallas import tpu as pltpu


def _mish_kernel(x_ref, o_ref):
    x = x_ref[...].astype(jnp.float32)
    # Numerically stable softplus: log(1 + exp(x)) = max(x, 0) + log1p(exp(-|x|))
    # (matches F.softplus(beta=1): for large x it degenerates to x, as desired).
    sp = jnp.maximum(x, 0.0) + jnp.log1p(jnp.exp(-jnp.abs(x)))
    o_ref[...] = (x * jnp.tanh(sp)).astype(o_ref.dtype)


def mish_forward(x, *, tile_rows=512, lanes=512):
    """Elementwise mish over an arbitrarily-shaped array.

    The array is flattened, zero-padded to a (rows_padded, lanes) slab
    (mish(0) == 0, so padding is harmless), processed in lane-dense
    (tile_rows, lanes) blocks, then sliced back to the original shape.
    """
    orig_shape = x.shape
    orig_dtype = x.dtype

    flat = x.reshape(-1)
    n = flat.shape[0]

    # Lane-dense layout: last dim is a multiple of 128 -> unmasked vector stores.
    rows = pl.cdiv(n, lanes)
    # Block rows must be a multiple of the 8-wide sublane dimension.
    tr = min(tile_rows, rows)
    tr = max(8, (tr // 8) * 8)
    rows_padded = pl.cdiv(rows, tr) * tr
    total_padded = rows_padded * lanes

    flat_padded = jnp.pad(flat, (0, total_padded - n))
    x2d = flat_padded.reshape(rows_padded, lanes)

    grid = (rows_padded // tr,)

    out2d = pl.pallas_call(
        _mish_kernel,
        out_shape=jax.ShapeDtypeStruct((rows_padded, lanes), orig_dtype),
        grid_spec=pltpu.PrefetchScalarGridSpec(
            num_scalar_prefetch=0,
            grid=grid,
            in_specs=[pl.BlockSpec((tr, lanes), lambda i: (i, 0))],
            out_specs=pl.BlockSpec((tr, lanes), lambda i: (i, 0)),
        ),
        compiler_params=pltpu.CompilerParams(
            # Pure elementwise, no carried state -> parallel grid axis
            # (uses both TensorCores on v7x).
            dimension_semantics=("parallel",),
        ),
    )(x2d)

    return out2d.reshape(-1)[:n].reshape(orig_shape)


def _reference(x):
    xf = x.astype(jnp.float32)
    sp = jnp.maximum(xf, 0.0) + jnp.log1p(jnp.exp(-jnp.abs(xf)))
    return (xf * jnp.tanh(sp)).astype(x.dtype)


if __name__ == "__main__":
    key = jax.random.PRNGKey(0)

    # Small shape consistent with a conv-feature-map input: (B, C, H, W).
    B, C, H, W = 2, 4, 16, 16
    x = jax.random.normal(key, (B, C, H, W), dtype=jnp.float32) * 3.0

    y = mish_forward(x)
    jax.block_until_ready(y)

    y_ref = _reference(x)
    assert y.shape == x.shape
    assert jnp.allclose(y, y_ref, atol=1e-5, rtol=1e-5), (
        float(jnp.max(jnp.abs(y - y_ref))))

    print("KERNEL_OK")
</pallas_src>

<mosaic_0001>
module attributes {stable_mosaic.version = 11 : i64} {
  func.func @_mish_kernel(%arg0: i32, %arg1: memref<8x512xf32, #tpu.memory_space<vmem>>, %arg2: memref<8x512xf32, #tpu.memory_space<vmem>>) attributes {dimension_semantics = [#tpu.dimension_semantics<parallel>], iteration_bounds = array<i64: 1>, scalar_prefetch = 0 : i64, scratch_operands = 0 : i64, tpu.core_type = #tpu.core_type<tc>, window_params = [{transform_indices = @transform_0, window_bounds = array<i64: 8, 512>}, {transform_indices = @transform_1, window_bounds = array<i64: 8, 512>}]} {
    %c0 = arith.constant 0 : index
    %c0_0 = arith.constant 0 : index
    %0 = vector.load %arg1[%c0, %c0_0] : memref<8x512xf32, #tpu.memory_space<vmem>>, vector<8x512xf32>
    %cst = arith.constant 0.000000e+00 : f32
    %1 = vector.broadcast %cst : f32 to vector<8x512xf32>
    %2 = arith.maximumf %0, %1 : vector<8x512xf32>
    %3 = math.absf %0 : vector<8x512xf32>
    %cst_1 = arith.constant 0.000000e+00 : f32
    %4 = vector.broadcast %cst_1 : f32 to vector<8x512xf32>
    %5 = arith.subf %4, %3 : vector<8x512xf32>
    %6 = math.exp %5 : vector<8x512xf32>
    %7 = math.log1p %6 : vector<8x512xf32>
    %8 = arith.addf %2, %7 : vector<8x512xf32>
    %9 = math.tanh %8 : vector<8x512xf32>
    %10 = arith.mulf %0, %9 : vector<8x512xf32>
    %c0_2 = arith.constant 0 : index
    %c0_3 = arith.constant 0 : index
    %11 = vector.load %arg2[%c0_2, %c0_3] : memref<8x512xf32, #tpu.memory_space<vmem>>, vector<8x512xf32>
    tpu.vector_store %arg2[%c0_2, %c0_3], %10 {strides = array<i32>} : memref<8x512xf32, #tpu.memory_space<vmem>>, vector<8x512xf32>,
    return
  }
  func.func @transform_0(%arg0: i32) -> (i32, i32) {
    %c0_i32 = arith.constant 0 : i32
    %c0_i32_0 = arith.constant 0 : i32
    return %arg0, %c0_i32 : i32, i32
  }
  func.func @transform_1(%arg0: i32) -> (i32, i32) {
    %c0_i32 = arith.constant 0 : i32
    %c0_i32_0 = arith.constant 0 : i32
    return %arg0, %c0_i32 : i32, i32
  }
}

</mosaic_0001>

<llo_original>
// kernel: tpu_custom_call.1
$region0: #{tpu_custom_call.1}
  #allocation0 [shape = 'u32[]', space=smem, size = 0x4, offset = 0x4, fixed_abs, tag = 'smem constant byte address 0x4 - core index']
  #allocation1 [shape = 'u32[72,128]{1,0:T(1,128)}', space=vmem, size = 0x9000, scoped, tag = 'internal scratch']
  %s0 = inlined_call_operand.hbm [shape: f32[8,512], index: 0, kind: input, shape index: {}]
  %s1 = inlined_call_operand.hbm [shape: f32[8,512], index: 1, kind: output, shape index: {}]
  %s2 = sld [smem:[#allocation0]]
  $region18: #{tpu_custom_call.1} parent=0
    _
  %s4 = ssub.s32 1, %s2
  %s5 = scalar_select 0, %s4, %s2
  $region1: #{tpu_custom_call.1} parent=0
    #allocation2 [shape = 'u8[16384]{0}', space=vmem, size = 0x4000, scoped, tag = 'input window, operand 0, single buffered']
    #allocation3 [shape = 's32[1]{0}', space=sflag, size = 0x4, scoped, tag = 'scoped memory for tpu_custom_call.1']
    #allocation4 [shape = 's32[1]{0}', space=sflag, size = 0x4, scoped, tag = 'scoped memory for tpu_custom_call.1']
    #allocation5 [shape = 'u8[16384]{0}', space=vmem, size = 0x4000, scoped, tag = 'output window, operand 0, single buffered']
    %6 = vsyncpa [#allocation3], 0
    %7 = vsyncpa [#allocation4], 0
    // Predicated region
    $region2: #{tpu_custom_call.1} parent=1 // pred_check
      _
    $region3: #{tpu_custom_call.1} parent=1 // pred_check_branch
      %9 = sbr.rel (0) target = $region5
    $region4: #{tpu_custom_call.1} parent=1 // pred_region
      %11 = vsyncadd [#allocation3], 0
      %s13 = sshll.u32 %s0, 4
      %s14 = int_to_ptr.hbm [resolvable:$true] %s13
      %s15 = sshll.u32 [#allocation2], 4
      %s16 = int_to_ptr.vmem [resolvable:$true] %s15
      %18 = dma.hbm_to_vmem [thread:$0]  %s14, 512, %s16, [#allocation3]
    $region5: #{tpu_custom_call.1} parent=1 // pred_fallthru
      _
    // Predicated region
    $region6: #{tpu_custom_call.1} parent=1 // pred_check
      _
    $region7: #{tpu_custom_call.1} parent=1 // pred_check_branch
      %20 = sbr.rel (0) target = $region9
    $region8: #{tpu_custom_call.1} parent=1 // pred_region
      %22 = dma.done [#allocation3], 512
    $region9: #{tpu_custom_call.1} parent=1 // pred_fallthru
      _
    %v23 = vld [vmem:[#allocation2] sm:$0xff]
    %v24 = vld [vmem:[#allocation2 + $0x8] sm:$0xff]
    %v25 = vld [vmem:[#allocation2 + $0x10] sm:$0xff]
    %v26 = vld [vmem:[#allocation2 + $0x18] sm:$0xff]
    %v27 = vmax.f32 %v23, 0.0
    %v28 = vmax.f32 %v24, 0.0
    %v29 = vmax.f32 %v25, 0.0
    %v30 = vmax.f32 %v26, 0.0
    %v31 = vand.u32 2147483647, %v23
    %v32 = vand.u32 2147483647, %v24
    %v33 = vand.u32 2147483647, %v25
    %v34 = vand.u32 2147483647, %v26
    %v35 = vsub.f32 0.0, %v31
    %v36 = vsub.f32 0.0, %v32
    %v37 = vsub.f32 0.0, %v33
    %v38 = vsub.f32 0.0, %v34
    %v39 = vmul.f32 %v35, 1.442695
    %v40 = vpow.pop %v39
    %v41 = vmul.f32 %v36, 1.442695
    %v42 = vpow.pop %v41
    %v43 = vmul.f32 %v37, 1.442695
    %v44 = vpow.pop %v43
    %v45 = vmul.f32 %v38, 1.442695
    %v46 = vpow.pop %v45
    %v47 = vadd.f32 %v40, 1.0
    %v48 = vlog2.pop %v47
    %v49 = vmul.f32 %v48, 0.6931472
    %v50 = vmul.f32 -0.5, %v40
    %v51 = vadd.f32 %v50, 1.0
    %v52 = vmul.f32 %v51, %v40
    %v53 = vand.u32 2147483647, %v40
    %vm54 = vcmp.lt.f32.partialorder %v53, 0.0004427343
    %v55 = vsel %vm54, %v52, %v49
    %v56 = vadd.f32 %v42, 1.0
    %v57 = vlog2.pop %v56
    %v58 = vmul.f32 %v57, 0.6931472
    %v59 = vmul.f32 -0.5, %v42
    %v60 = vadd.f32 %v59, 1.0
    %v61 = vmul.f32 %v60, %v42
    %v62 = vand.u32 2147483647, %v42
    %vm63 = vcmp.lt.f32.partialorder %v62, 0.0004427343
    %v64 = vsel %vm63, %v61, %v58
    %v65 = vadd.f32 %v44, 1.0
    %v66 = vlog2.pop %v65
    %v67 = vmul.f32 %v66, 0.6931472
    %v68 = vmul.f32 -0.5, %v44
    %v69 = vadd.f32 %v68, 1.0
    %v70 = vmul.f32 %v69, %v44
    %v71 = vand.u32 2147483647, %v44
    %vm72 = vcmp.lt.f32.partialorder %v71, 0.0004427343
    %v73 = vsel %vm72, %v70, %v67
    %v74 = vadd.f32 %v46, 1.0
    %v75 = vlog2.pop %v74
    %v76 = vmul.f32 %v75, 0.6931472
    %v77 = vmul.f32 -0.5, %v46
    %v78 = vadd.f32 %v77, 1.0
    %v79 = vmul.f32 %v78, %v46
    %v80 = vand.u32 2147483647, %v46
    %vm81 = vcmp.lt.f32.partialorder %v80, 0.0004427343
    %v82 = vsel %vm81, %v79, %v76
    %v83 = vadd.f32 %v27, %v55
    %v84 = vadd.f32 %v28, %v64
    %v85 = vadd.f32 %v29, %v73
    %v86 = vadd.f32 %v30, %v82
    %v87 = vtanh.pop %v83
    %v88 = vtanh.pop %v84
    %v89 = vtanh.pop %v85
    %v90 = vtanh.pop %v86
    %v91 = vmul.f32 %v23, %v87
    %v92 = vmul.f32 %v24, %v88
    %v93 = vmul.f32 %v25, %v89
    %v94 = vmul.f32 %v26, %v90
    %95 = vst [vmem:[#allocation5] sm:$0xff] %v91
    %96 = vst [vmem:[#allocation5 + $0x8] sm:$0xff] %v92
    %97 = vst [vmem:[#allocation5 + $0x10] sm:$0xff] %v93
    %98 = vst [vmem:[#allocation5 + $0x18] sm:$0xff] %v94
    // Predicated region
    $region10: #{tpu_custom_call.1} parent=1 // pred_check
      _
    $region11: #{tpu_custom_call.1} parent=1 // pred_check_branch
      %100 = sbr.rel (0) target = $region13
    $region12: #{tpu_custom_call.1} parent=1 // pred_region
      %102 = vsyncadd [#allocation4], 0
      %s104 = sshll.u32 [#allocation5], 4
      %s105 = int_to_ptr.vmem [resolvable:$true] %s104
      %s106 = sshll.u32 %s1, 4
      %s107 = int_to_ptr.hbm [resolvable:$true] %s106
      %109 = dma.vmem_to_hbm [thread:$0]  %s105, 512, %s107, [#allocation4]
    $region13: #{tpu_custom_call.1} parent=1 // pred_fallthru
      _
    // Predicated region
    $region14: #{tpu_custom_call.1} parent=1 // pred_check
      _
    $region15: #{tpu_custom_call.1} parent=1 // pred_check_branch
      %111 = sbr.rel (0) target = $region17
    $region16: #{tpu_custom_call.1} parent=1 // pred_region
      %113 = dma.done [#allocation4], 512
    $region17: #{tpu_custom_call.1} parent=1 // pred_fallthru
      _
    %114 = vsyncpa [#allocation3], 1
    %115 = vsyncpa [#allocation4], 1

</llo_original>
